<compile_context>
chip_gen: v6e
topology: v6e:2x2x1
jax: 0.10.0
libtpu: 0.0.40
codegen_flags: <defaults>
</compile_context>

<pallas_src>
import jax
import jax.numpy as jnp
from jax import lax
from jax.experimental import pallas as pl
from jax.experimental.pallas import tpu as pltpu

LANE = 128
SUBLANE = 8


def _round_up(x, m):
    return ((x + m - 1) // m) * m


# -----------------------------------------------------------------------------
# Kernel
# -----------------------------------------------------------------------------
def actor_critic_kernel(x_ref, w1_ref, b1_ref, w2t_ref, b2t_ref, out_ref):
    x = x_ref[...]                                            # (tile_b, D)
    # Fused layer 1: [actor hidden | critic hidden | zero pad] -> ReLU.
    h = jnp.dot(x, w1_ref[...], preferred_element_type=jnp.float32) + b1_ref[...]
    h = jnp.maximum(h, 0.0)                                   # (tile_b, H2p)
    # Fused, block-diagonal layer 2 computed already TRANSPOSED via an NT
    # matmul (contract the minor dims of both operands, like q @ k.T):
    #   out_t[j, b] = sum_k w2t[j, k] * h[b, k]               # (out_rows, tile_b)
    # Batch lands on the lane axis -> the store is lane-dense and tiny.
    out_t = lax.dot_general(
        w2t_ref[...], h, (((1,), (1,)), ((), ())),
        preferred_element_type=jnp.float32)
    out_ref[...] = (out_t + b2t_ref[...]).astype(out_ref.dtype)


# -----------------------------------------------------------------------------
# Parameter packing
# -----------------------------------------------------------------------------
def pack_params(params):
    """Pack raw (aw1, ab1, aw2, ab2, cw1, cb1, cw2, cb2) into fused, padded
    weights.  All padding is exact zeros, so the fused math matches the
    unfused reference up to f32 reassociation."""
    aw1, ab1, aw2, ab2, cw1, cb1, cw2, cb2 = params
    D, H = aw1.shape
    A = aw2.shape[1]
    H2 = 2 * H
    h2p = _round_up(H2, LANE)             # fused hidden width, lane aligned
    out_rows = _round_up(A + 1, SUBLANE)  # transposed output rows (>= A + 1)

    w1 = jnp.zeros((D, h2p), jnp.float32).at[:, :H].set(aw1).at[:, H:H2].set(cw1)
    b1 = jnp.zeros((1, h2p), jnp.float32).at[:, :H].set(ab1).at[:, H:H2].set(cb1)
    # Transposed layer-2 weights: row j produces output j.  Rows [0:A) read
    # the actor hidden columns [0:H); row A reads the critic hidden columns
    # [H:2H); remaining rows/columns are exact zeros.
    w2t = (jnp.zeros((out_rows, h2p), jnp.float32)
           .at[:A, :H].set(aw2.T)
           .at[A, H:H2].set(cw2[:, 0]))
    b2t = (jnp.zeros((out_rows, 1), jnp.float32)
           .at[:A, 0].set(ab2[0])
           .at[A, 0].set(cb2[0, 0]))
    # TODO(synk): for obs_dim << 128, pack 128 // obs_dim batch rows per lane
    # row (block-replicated W1) so the state DMA is fully lane-dense.
    return (w1, b1, w2t, b2t), A


# -----------------------------------------------------------------------------
# Tiling / VMEM accounting
# -----------------------------------------------------------------------------
def _vmem_capacity_bytes():
    """Physical VMEM per core; conservative (v7x: 64 MiB) if the query fails."""
    try:
        info = pltpu.get_tpu_info()
        for attr in ("vmem_capacity_bytes", "vmem_size_bytes", "vmem_bytes"):
            val = getattr(info, attr, None)
            if val:
                return int(val)
    except Exception:
        pass
    return 64 << 20


def _per_row_vmem_bytes(obs_dim, h2p, out_rows, itemsize=4):
    """VMEM bytes per batch row of one tile: double-buffered input/output DMA
    blocks (the (tile_b, D) input block is LANE-padded in VMEM) plus ~2 copies
    of the in-flight hidden activation around the ReLU."""
    d_pad = _round_up(obs_dim, LANE)
    return (2 * (d_pad + out_rows) + 2 * h2p) * itemsize


def _choose_tile_b(batch, per_row_bytes, budget_bytes, min_grid=8):
    """Largest multiple-of-LANE batch tile that fits the pipelined-VMEM budget,
    capped so the grid keeps >= ~min_grid steps when the batch allows it
    (v7x megacore sharding + input/compute/writeback pipelining)."""
    budget_tile = max(LANE, (budget_bytes // per_row_bytes) // LANE * LANE)
    target = _round_up(max(1, -(-batch // min_grid)), LANE)
    return int(max(LANE, min(budget_tile, target)))


# -----------------------------------------------------------------------------
# Forward wrapper
# -----------------------------------------------------------------------------
def actor_critic_forward(state, packed, n_actions, *, tile_b=None):
    """state: [B, obs_dim] f32, packed: output of pack_params.
    Returns (action_pred [B, n_actions], value_pred [B, 1])."""
    B, D = state.shape
    w1, b1, w2t, b2t = packed
    h2p = w1.shape[1]
    out_rows = w2t.shape[0]
    itemsize = state.dtype.itemsize

    vmem_cap = _vmem_capacity_bytes()
    # ~24 MiB of pipelined tiles on v7x (64 MiB VMEM); ~88 MiB on v5e/v6e (128 MiB).
    tile_budget = max(16 << 20, min(88 << 20, vmem_cap - (40 << 20)))
    per_row = _per_row_vmem_bytes(D, h2p, out_rows, itemsize)
    if tile_b is None:
        tile_b = _choose_tile_b(B, per_row, tile_budget)

    # Pad the batch to a multiple of tile_b (zero rows, sliced off below)
    # instead of an unchecked single full-array fallback.
    b_pad = _round_up(max(B, tile_b), tile_b)
    if b_pad != B:
        state = jnp.pad(state, ((0, b_pad - B), (0, 0)))
    grid = (b_pad // tile_b,)

    # Weights/biases stay fully resident in VMEM across grid steps.  They get
    # double-buffered by default; at these sizes that is only tens of KiB, so
    # pipeline_mode=pl.Buffered(1) is not worth the lowering surface here —
    # revisit if obs_dim/hidden grow into the thousands.
    weight_vmem = 2 * sum(
        _round_up(a.shape[0], SUBLANE) * _round_up(a.shape[1], LANE) * a.dtype.itemsize
        for a in (w1, b1, w2t, b2t))
    need = weight_vmem + tile_b * per_row + (4 << 20)
    vmem_limit = int(min(max(32 << 20, need), vmem_cap - (8 << 20)))

    weight_hbm = sum(int(a.size) * a.dtype.itemsize for a in (w1, b1, w2t, b2t))
    cost = pl.CostEstimate(
        flops=2 * b_pad * (D * h2p + h2p * out_rows),
        transcendentals=0,
        # HBM traffic: state read + tiny transposed output write + weights
        # (lane padding of VMEM blocks adds no HBM bytes).
        bytes_accessed=int(b_pad * D * itemsize + out_rows * b_pad * 4 + weight_hbm),
    )

    def resident(shape):
        return pl.BlockSpec(shape, lambda i: (0, 0))

    out_t = pl.pallas_call(
        actor_critic_kernel,
        out_shape=jax.ShapeDtypeStruct((out_rows, b_pad), jnp.float32),
        grid_spec=pltpu.PrefetchScalarGridSpec(
            num_scalar_prefetch=0,
            grid=grid,
            in_specs=[
                # State tile: auto double-buffered / pipelined across the grid.
                # TODO(synk): if the caller can hold `state` in HBM as bf16,
                # cast w1/w2t to bf16 too (keep bias + ReLU in f32) to halve
                # the dominant input stream; kept f32 here to preserve the
                # module's f32 interface and v5e (no bf16 VPU) numerics.
                pl.BlockSpec((tile_b, D), lambda i: (i, 0)),
                resident(w1.shape), resident(b1.shape),
                resident(w2t.shape), resident(b2t.shape),
            ],
            out_specs=pl.BlockSpec((out_rows, tile_b), lambda i: (0, i)),
        ),
        compiler_params=pltpu.CompilerParams(
            dimension_semantics=("parallel",),   # batch axis shards across TCs
            vmem_limit_bytes=vmem_limit,
        ),
        cost_estimate=cost,
    )(state, w1, b1, w2t, b2t)

    # The slab is only (out_rows=8, B_pad) f32 (~32 B per batch row), so these
    # slices/transposes re-read almost nothing; callers wanting zero extra
    # passes can consume `out_t` directly or keep this inside their jit.
    action_pred = out_t[:n_actions, :B].T
    value_pred = out_t[n_actions:n_actions + 1, :B].T
    return action_pred, value_pred


# -----------------------------------------------------------------------------
# Init + reference
# -----------------------------------------------------------------------------
def init_params(key, obs_dim, hidden_dim, n_actions):
    """Deterministic PyTorch-Linear-style init (uniform +/- 1/sqrt(fan_in))."""
    ks = jax.random.split(key, 8)

    def linear(kw, kb, fan_in, fan_out):
        bound = 1.0 / jnp.sqrt(jnp.float32(fan_in))
        w = jax.random.uniform(kw, (fan_in, fan_out), jnp.float32, -bound, bound)
        b = jax.random.uniform(kb, (1, fan_out), jnp.float32, -bound, bound)
        return w, b

    aw1, ab1 = linear(ks[0], ks[1], obs_dim, hidden_dim)
    aw2, ab2 = linear(ks[2], ks[3], hidden_dim, n_actions)
    cw1, cb1 = linear(ks[4], ks[5], obs_dim, hidden_dim)
    cw2, cb2 = linear(ks[6], ks[7], hidden_dim, 1)
    return (aw1, ab1, aw2, ab2, cw1, cb1, cw2, cb2)


def reference_forward(state, params):
    aw1, ab1, aw2, ab2, cw1, cb1, cw2, cb2 = params
    h_a = jnp.maximum(state @ aw1 + ab1, 0.0)
    act = h_a @ aw2 + ab2
    h_c = jnp.maximum(state @ cw1 + cb1, 0.0)
    val = h_c @ cw2 + cb2
    return act, val


if __name__ == "__main__":
    B, OBS, HID, ACT = 8, 16, 32, 4

    key = jax.random.PRNGKey(0)
    k_state, k_params, k_state2 = jax.random.split(key, 3)
    state = jax.random.normal(k_state, (B, OBS), jnp.float32)
    params = init_params(k_params, OBS, HID, ACT)

    packed, n_actions = pack_params(params)
    action_pred, value_pred = actor_critic_forward(state, packed, n_actions)
    jax.block_until_ready((action_pred, value_pred))

    act_ref, val_ref = reference_forward(state, params)
    assert action_pred.shape == (B, ACT)
    assert value_pred.shape == (B, 1)
    assert jnp.allclose(action_pred, act_ref, atol=1e-5, rtol=1e-4)
    assert jnp.allclose(value_pred, val_ref, atol=1e-5, rtol=1e-4)

    # Robustness check: batch not a multiple of the tile -> exercises the
    # wrapper-side zero-padding path and a multi-step grid.
    B2 = 300
    state2 = jax.random.normal(k_state2, (B2, OBS), jnp.float32)
    a2, v2 = actor_critic_forward(state2, packed, n_actions)
    jax.block_until_ready((a2, v2))
    a2_ref, v2_ref = reference_forward(state2, params)
    assert a2.shape == (B2, ACT) and v2.shape == (B2, 1)
    assert jnp.allclose(a2, a2_ref, atol=1e-5, rtol=1e-4)
    assert jnp.allclose(v2, v2_ref, atol=1e-5, rtol=1e-4)

    print("KERNEL_OK")
</pallas_src>

<mosaic_0001>
module attributes {stable_mosaic.version = 11 : i64} {
  func.func @actor_critic_kernel(%arg0: i32, %arg1: memref<128x16xf32, #tpu.memory_space<vmem>>, %arg2: memref<16x128xf32, #tpu.memory_space<vmem>>, %arg3: memref<1x128xf32, #tpu.memory_space<vmem>>, %arg4: memref<8x128xf32, #tpu.memory_space<vmem>>, %arg5: memref<8x1xf32, #tpu.memory_space<vmem>>, %arg6: memref<8x128xf32, #tpu.memory_space<vmem>>) attributes {dimension_semantics = [#tpu.dimension_semantics<parallel>], iteration_bounds = array<i64: 1>, scalar_prefetch = 0 : i64, scratch_operands = 0 : i64, tpu.core_type = #tpu.core_type<tc>, window_params = [{transform_indices = @transform_0, window_bounds = array<i64: 128, 16>}, {pipeline_mode = #tpu.pipeline_mode<synchronous>, transform_indices = @transform_1, window_bounds = array<i64: 16, 128>}, {pipeline_mode = #tpu.pipeline_mode<synchronous>, transform_indices = @transform_2, window_bounds = array<i64: 1, 128>}, {pipeline_mode = #tpu.pipeline_mode<synchronous>, transform_indices = @transform_3, window_bounds = array<i64: 8, 128>}, {pipeline_mode = #tpu.pipeline_mode<synchronous>, transform_indices = @transform_4, window_bounds = array<i64: 8, 1>}, {transform_indices = @transform_5, window_bounds = array<i64: 8, 128>}]} {
    %c0 = arith.constant 0 : index
    %c0_0 = arith.constant 0 : index
    %0 = vector.load %arg1[%c0, %c0_0] : memref<128x16xf32, #tpu.memory_space<vmem>>, vector<128x16xf32>
    %c0_1 = arith.constant 0 : index
    %c0_2 = arith.constant 0 : index
    %1 = vector.load %arg2[%c0_1, %c0_2] : memref<16x128xf32, #tpu.memory_space<vmem>>, vector<16x128xf32>
    %cst = arith.constant dense<0.000000e+00> : vector<128x128xf32>
    %2 = tpu.matmul %0, %1, %cst {dimension_numbers = #tpu.dot_dimension_numbers<[1], [0], [0], [1], [0, 0, 1, 1], [], []>} : vector<128x16xf32>, vector<16x128xf32>, vector<128x128xf32> -> vector<128x128xf32>
    %c0_3 = arith.constant 0 : index
    %c0_4 = arith.constant 0 : index
    %3 = vector.load %arg3[%c0_3, %c0_4] : memref<1x128xf32, #tpu.memory_space<vmem>>, vector<1x128xf32>
    %4 = vector.broadcast %3 : vector<1x128xf32> to vector<128x128xf32>
    %5 = arith.addf %2, %4 : vector<128x128xf32>
    %cst_5 = arith.constant 0.000000e+00 : f32
    %6 = vector.broadcast %cst_5 : f32 to vector<128x128xf32>
    %7 = arith.maximumf %5, %6 : vector<128x128xf32>
    %c0_6 = arith.constant 0 : index
    %c0_7 = arith.constant 0 : index
    %8 = vector.load %arg4[%c0_6, %c0_7] : memref<8x128xf32, #tpu.memory_space<vmem>>, vector<8x128xf32>
    %cst_8 = arith.constant dense<0.000000e+00> : vector<8x128xf32>
    %9 = tpu.matmul %8, %7, %cst_8 {dimension_numbers = #tpu.dot_dimension_numbers<[1], [1], [0], [0], [0, 0, 1, 0], [], []>} : vector<8x128xf32>, vector<128x128xf32>, vector<8x128xf32> -> vector<8x128xf32>
    %c0_9 = arith.constant 0 : index
    %c0_10 = arith.constant 0 : index
    %10 = vector.load %arg5[%c0_9, %c0_10] : memref<8x1xf32, #tpu.memory_space<vmem>>, vector<8x1xf32>
    %11 = vector.broadcast %10 : vector<8x1xf32> to vector<8x128xf32>
    %12 = arith.addf %9, %11 : vector<8x128xf32>
    %c0_11 = arith.constant 0 : index
    %c0_12 = arith.constant 0 : index
    %13 = vector.load %arg6[%c0_11, %c0_12] : memref<8x128xf32, #tpu.memory_space<vmem>>, vector<8x128xf32>
    tpu.vector_store %arg6[%c0_11, %c0_12], %12 {strides = array<i32>} : memref<8x128xf32, #tpu.memory_space<vmem>>, vector<8x128xf32>,
    return
  }
  func.func @transform_0(%arg0: i32) -> (i32, i32) {
    %c0_i32 = arith.constant 0 : i32
    %c0_i32_0 = arith.constant 0 : i32
    return %arg0, %c0_i32 : i32, i32
  }
  func.func @transform_1(%arg0: i32) -> (i32, i32) {
    %c0_i32 = arith.constant 0 : i32
    %c0_i32_0 = arith.constant 0 : i32
    %c0_i32_1 = arith.constant 0 : i32
    return %c0_i32, %c0_i32_0 : i32, i32
  }
  func.func @transform_2(%arg0: i32) -> (i32, i32) {
    %c0_i32 = arith.constant 0 : i32
    %c0_i32_0 = arith.constant 0 : i32
    %c0_i32_1 = arith.constant 0 : i32
    return %c0_i32, %c0_i32_0 : i32, i32
  }
  func.func @transform_3(%arg0: i32) -> (i32, i32) {
    %c0_i32 = arith.constant 0 : i32
    %c0_i32_0 = arith.constant 0 : i32
    %c0_i32_1 = arith.constant 0 : i32
    return %c0_i32, %c0_i32_0 : i32, i32
  }
  func.func @transform_4(%arg0: i32) -> (i32, i32) {
    %c0_i32 = arith.constant 0 : i32
    %c0_i32_0 = arith.constant 0 : i32
    %c0_i32_1 = arith.constant 0 : i32
    return %c0_i32, %c0_i32_0 : i32, i32
  }
  func.func @transform_5(%arg0: i32) -> (i32, i32) {
    %c0_i32 = arith.constant 0 : i32
    %c0_i32_0 = arith.constant 0 : i32
    return %c0_i32, %arg0 : i32, i32
  }
}

</mosaic_0001>

<llo_original>
// kernel: tpu_custom_call.1
$region0: #{tpu_custom_call.1}
  #allocation0 [shape = 'u32[]', space=smem, size = 0x4, offset = 0x4, fixed_abs, tag = 'smem constant byte address 0x4 - core index']
  #allocation1 [shape = 'u32[144,128]{1,0:T(1,128)}', space=vmem, size = 0x12000, scoped, tag = 'internal scratch']
  %s0 = inlined_call_operand.vmem [shape: f32[128,16], index: 0, kind: input, shape index: {}]
  %s1 = inlined_call_operand.vmem [shape: f32[16,128], index: 1, kind: input, shape index: {}]
  %s2 = inlined_call_operand.vmem [shape: f32[1,128], index: 2, kind: input, shape index: {}]
  %s3 = inlined_call_operand.vmem [shape: f32[8,128], index: 3, kind: input, shape index: {}]
  %s4 = inlined_call_operand.vmem [shape: f32[8,1], index: 4, kind: input, shape index: {}]
  %s5 = inlined_call_operand.hbm [shape: f32[8,128], index: 5, kind: output, shape index: {}]
  %s6 = sld [smem:[#allocation0]]
  $region30: #{tpu_custom_call.1} parent=0
    _
  %s8 = ssub.s32 1, %s6
  %s9 = scalar_select 0, %s8, %s6
  $region1: #{tpu_custom_call.1} parent=0
    #allocation2 [shape = 'u8[4096]{0}', space=vmem, size = 0x1000, scoped, tag = 'output window, operand 0, single buffered']
    #allocation3 [shape = 's32[1]{0}', space=sflag, size = 0x4, scoped, tag = 'scoped memory for tpu_custom_call.1']
    %10 = vsyncpa [#allocation3], 0
    // Predicated region
    $region2: #{tpu_custom_call.1} parent=1 // pred_check
      _
    $region3: #{tpu_custom_call.1} parent=1 // pred_check_branch
      %12 = sbr.rel (0) target = $region5
    $region4: #{tpu_custom_call.1} parent=1 // pred_region
      _
    $region5: #{tpu_custom_call.1} parent=1 // pred_fallthru
      _
    // Predicated region
    $region6: #{tpu_custom_call.1} parent=1 // pred_check
      _
    $region7: #{tpu_custom_call.1} parent=1 // pred_check_branch
      %14 = sbr.rel (0) target = $region9
    $region8: #{tpu_custom_call.1} parent=1 // pred_region
      _
    $region9: #{tpu_custom_call.1} parent=1 // pred_fallthru
      _
    // Predicated region
    $region10: #{tpu_custom_call.1} parent=1 // pred_check
      _
    $region11: #{tpu_custom_call.1} parent=1 // pred_check_branch
      %16 = sbr.rel (0) target = $region13
    $region12: #{tpu_custom_call.1} parent=1 // pred_region
      _
    $region13: #{tpu_custom_call.1} parent=1 // pred_fallthru
      _
    // Predicated region
    $region14: #{tpu_custom_call.1} parent=1 // pred_check
      _
    $region15: #{tpu_custom_call.1} parent=1 // pred_check_branch
      %18 = sbr.rel (0) target = $region17
    $region16: #{tpu_custom_call.1} parent=1 // pred_region
      _
    $region17: #{tpu_custom_call.1} parent=1 // pred_fallthru
      _
    // Predicated region
    $region18: #{tpu_custom_call.1} parent=1 // pred_check
      _
    $region19: #{tpu_custom_call.1} parent=1 // pred_check_branch
      %20 = sbr.rel (0) target = $region21
    $region20: #{tpu_custom_call.1} parent=1 // pred_region
      _
    $region21: #{tpu_custom_call.1} parent=1 // pred_fallthru
      _
    %v21 = vld [vmem:[%s0] sm:$0xff]
    %v22 = vld [vmem:[%s0 + $0x8] sm:$0xff]
    %v23 = vld [vmem:[%s0 + $0x10] sm:$0xff]
    %v24 = vld [vmem:[%s0 + $0x18] sm:$0xff]
    %v25 = vld [vmem:[%s0 + $0x20] sm:$0xff]
    %v26 = vld [vmem:[%s0 + $0x28] sm:$0xff]
    %v27 = vld [vmem:[%s0 + $0x30] sm:$0xff]
    %v28 = vld [vmem:[%s0 + $0x38] sm:$0xff]
    %v29 = vld [vmem:[%s0 + $0x40] sm:$0xff]
    %v30 = vld [vmem:[%s0 + $0x48] sm:$0xff]
    %v31 = vld [vmem:[%s0 + $0x50] sm:$0xff]
    %v32 = vld [vmem:[%s0 + $0x58] sm:$0xff]
    %v33 = vld [vmem:[%s0 + $0x60] sm:$0xff]
    %v34 = vld [vmem:[%s0 + $0x68] sm:$0xff]
    %v35 = vld [vmem:[%s0 + $0x70] sm:$0xff]
    %v36 = vld [vmem:[%s0 + $0x78] sm:$0xff]
    %v37 = vld [vmem:[%s1] sm:$0xff]
    %v38 = vld [vmem:[%s1 + $0x8] sm:$0xff]
    %v39 = vld [vmem:[%s2] sm:$0x1]
    %v41 = vlaneseq
    %v42 = vshrl.u32 %v41, 7
    %v43 = vsub.s32 0, %v42
    %v44 = vrot.slane %v39, %v43
    %vm46 = vcmask 130048
    %v48 = vsel %vm46, %v21, 0
    %v51 = vsel %vm46, %v22, 0
    %v54 = vsel %vm46, %v23, 0
    %v57 = vsel %vm46, %v24, 0
    %v60 = vsel %vm46, %v25, 0
    %v63 = vsel %vm46, %v26, 0
    %v66 = vsel %vm46, %v27, 0
    %v69 = vsel %vm46, %v28, 0
    %v72 = vsel %vm46, %v29, 0
    %v75 = vsel %vm46, %v30, 0
    %v78 = vsel %vm46, %v31, 0
    %v81 = vsel %vm46, %v32, 0
    %v84 = vsel %vm46, %v33, 0
    %v87 = vsel %vm46, %v34, 0
    %v90 = vsel %vm46, %v35, 0
    %v93 = vsel %vm46, %v36, 0
    %95 = vmatprep.subr.mxu0 0.0
    %96 = vmatpush1.msra.mxu0 0.0
    %97 = vmatprep.subr.mxu0 0.0
    %98 = vmatpush1.msra.mxu0 0.0
    %99 = vmatprep.subr.mxu0 0.0
    %100 = vmatpush1.msra.mxu0 0.0
    %101 = vmatprep.subr.mxu0 0.0
    %102 = vmatpush1.msra.mxu0 0.0
    %103 = vmatprep.subr.mxu0 0.0
    %104 = vmatpush1.msra.mxu0 0.0
    %105 = vmatprep.subr.mxu0 0.0
    %106 = vmatpush1.msra.mxu0 0.0
    %107 = vmatprep.subr.mxu0 0.0
    %108 = vmatpush1.msra.mxu0 0.0
    %109 = vmatprep.subr.mxu0 0.0
    %110 = vmatpush1.msra.mxu0 0.0
    %111 = vmatprep.subr.mxu0 0.0
    %112 = vmatpush1.msra.mxu0 0.0
    %113 = vmatprep.subr.mxu0 0.0
    %114 = vmatpush1.msra.mxu0 0.0
    %115 = vmatprep.subr.mxu0 0.0
    %116 = vmatpush1.msra.mxu0 0.0
    %117 = vmatprep.subr.mxu0 0.0
    %118 = vmatpush1.msra.mxu0 0.0
    %119 = vmatprep.subr.mxu0 0.0
    %120 = vmatpush1.msra.mxu0 0.0
    %121 = vmatprep.subr.mxu0 0.0
    %122 = vmatpush1.msra.mxu0 0.0
    %123 = vmatprep.subr.mxu0 0.0
    %124 = vmatpush1.msra.mxu0 %v38
    %125 = vmatprep.subr.mxu0 0.0
    %126 = vmatpush1.msra.mxu0 %v37
    %127 = vmatprep.subr.mxu0 0.0
    %128 = vmatpush2.msra.mxu0 0.0
    %129 = vmatprep.subr.mxu0 0.0
    %130 = vmatpush2.msra.mxu0 0.0
    %131 = vmatprep.subr.mxu0 0.0
    %132 = vmatpush2.msra.mxu0 0.0
    %133 = vmatprep.subr.mxu0 0.0
    %134 = vmatpush2.msra.mxu0 0.0
    %135 = vmatprep.subr.mxu0 0.0
    %136 = vmatpush2.msra.mxu0 0.0
    %137 = vmatprep.subr.mxu0 0.0
    %138 = vmatpush2.msra.mxu0 0.0
    %139 = vmatprep.subr.mxu0 0.0
    %140 = vmatpush2.msra.mxu0 0.0
    %141 = vmatprep.subr.mxu0 0.0
    %142 = vmatpush2.msra.mxu0 0.0
    %143 = vmatprep.subr.mxu0 0.0
    %144 = vmatpush2.msra.mxu0 0.0
    %145 = vmatprep.subr.mxu0 0.0
    %146 = vmatpush2.msra.mxu0 0.0
    %147 = vmatprep.subr.mxu0 0.0
    %148 = vmatpush2.msra.mxu0 0.0
    %149 = vmatprep.subr.mxu0 0.0
    %150 = vmatpush2.msra.mxu0 0.0
    %151 = vmatprep.subr.mxu0 0.0
    %152 = vmatpush2.msra.mxu0 0.0
    %153 = vmatprep.subr.mxu0 0.0
    %154 = vmatpush2.msra.mxu0 0.0
    %155 = vmatprep.subr.mxu0 0.0
    %156 = vmatpush2.msra.mxu0 0.0
    %157 = vmatprep.subr.mxu0 0.0
    %158 = vmatpush2.msra.mxu0 0.0
    %159 = vmatprep.mubr.f32.mxu0 0.0
    %160 = vmatmul.mubr.f32.gmra.mxu0 %v48
    %v161 = vpop.f32.mrf.mxu0
    %v162 = vadd.f32 %v44, %v161
    %v163 = vpop.f32.mrf.mxu0
    %164 = vmatprep.mubr.f32.mxu0 0.0
    %165 = vmatmul.mubr.f32.gmra.mxu0 %v51
    %v166 = vpop.f32.mrf.mxu0
    %v167 = vadd.f32 %v44, %v166
    %v168 = vpop.f32.mrf.mxu0
    %169 = vmatprep.mubr.f32.mxu0 0.0
    %170 = vmatmul.mubr.f32.gmra.mxu0 %v54
    %v171 = vpop.f32.mrf.mxu0
    %v172 = vadd.f32 %v44, %v171
    %v173 = vpop.f32.mrf.mxu0
    %174 = vmatprep.mubr.f32.mxu0 0.0
    %175 = vmatmul.mubr.f32.gmra.mxu0 %v57
    %v176 = vpop.f32.mrf.mxu0
    %v177 = vadd.f32 %v44, %v176
    %v178 = vpop.f32.mrf.mxu0
    %179 = vmatprep.mubr.f32.mxu0 0.0
    %180 = vmatmul.mubr.f32.gmra.mxu0 %v60
    %v181 = vpop.f32.mrf.mxu0
    %v182 = vadd.f32 %v44, %v181
    %v183 = vpop.f32.mrf.mxu0
    %184 = vmatprep.mubr.f32.mxu0 0.0
    %185 = vmatmul.mubr.f32.gmra.mxu0 %v63
    %v186 = vpop.f32.mrf.mxu0
    %v187 = vadd.f32 %v44, %v186
    %v188 = vpop.f32.mrf.mxu0
    %189 = vmatprep.mubr.f32.mxu0 0.0
    %190 = vmatmul.mubr.f32.gmra.mxu0 %v66
    %v191 = vpop.f32.mrf.mxu0
    %v192 = vadd.f32 %v44, %v191
    %v193 = vpop.f32.mrf.mxu0
    %194 = vmatprep.mubr.f32.mxu0 0.0
    %195 = vmatmul.mubr.f32.gmra.mxu0 %v69
    %v196 = vpop.f32.mrf.mxu0
    %v197 = vadd.f32 %v44, %v196
    %v198 = vpop.f32.mrf.mxu0
    %199 = vmatprep.mubr.f32.mxu0 0.0
    %200 = vmatmul.mubr.f32.gmra.mxu0 %v72
    %v201 = vpop.f32.mrf.mxu0
    %v202 = vadd.f32 %v44, %v201
    %v203 = vpop.f32.mrf.mxu0
    %204 = vmatprep.mubr.f32.mxu0 0.0
    %205 = vmatmul.mubr.f32.gmra.mxu0 %v75
    %v206 = vpop.f32.mrf.mxu0
    %v207 = vadd.f32 %v44, %v206
    %v208 = vpop.f32.mrf.mxu0
    %209 = vmatprep.mubr.f32.mxu0 0.0
    %210 = vmatmul.mubr.f32.gmra.mxu0 %v78
    %v211 = vpop.f32.mrf.mxu0
    %v212 = vadd.f32 %v44, %v211
    %v213 = vpop.f32.mrf.mxu0
    %214 = vmatprep.mubr.f32.mxu0 0.0
    %215 = vmatmul.mubr.f32.gmra.mxu0 %v81
    %v216 = vpop.f32.mrf.mxu0
    %v217 = vadd.f32 %v44, %v216
    %v218 = vpop.f32.mrf.mxu0
    %219 = vmatprep.mubr.f32.mxu0 0.0
    %220 = vmatmul.mubr.f32.gmra.mxu0 %v84
    %v221 = vpop.f32.mrf.mxu0
    %v222 = vadd.f32 %v44, %v221
    %v223 = vpop.f32.mrf.mxu0
    %224 = vmatprep.mubr.f32.mxu0 0.0
    %225 = vmatmul.mubr.f32.gmra.mxu0 %v87
    %v226 = vpop.f32.mrf.mxu0
    %v227 = vadd.f32 %v44, %v226
    %v228 = vpop.f32.mrf.mxu0
    %229 = vmatprep.mubr.f32.mxu0 0.0
    %230 = vmatmul.mubr.f32.gmra.mxu0 %v90
    %v231 = vpop.f32.mrf.mxu0
    %v232 = vadd.f32 %v44, %v231
    %v233 = vpop.f32.mrf.mxu0
    %234 = vmatprep.mubr.f32.mxu0 0.0
    %235 = vmatmul.mubr.f32.gmra.mxu0 %v93
    %v236 = vpop.f32.mrf.mxu0
    %v237 = vadd.f32 %v44, %v236
    %v238 = vpop.f32.mrf.mxu0
    %239 = vdwg.mxu0
    %v240 = vmax.f32 %v162, 0.0
    %v241 = vmax.f32 %v167, 0.0
    %v242 = vmax.f32 %v172, 0.0
    %v243 = vmax.f32 %v177, 0.0
    %v244 = vmax.f32 %v182, 0.0
    %v245 = vmax.f32 %v187, 0.0
    %v246 = vmax.f32 %v192, 0.0
    %v247 = vmax.f32 %v197, 0.0
    %v248 = vmax.f32 %v202, 0.0
    %v249 = vmax.f32 %v207, 0.0
    %v250 = vmax.f32 %v212, 0.0
    %v251 = vmax.f32 %v217, 0.0
    %v252 = vmax.f32 %v222, 0.0
    %v253 = vmax.f32 %v227, 0.0
    %v254 = vmax.f32 %v232, 0.0
    %v255 = vmax.f32 %v237, 0.0
    %v256 = vld [vmem:[%s3] sm:$0xff]
    %v257 = vld [vmem:[%s4] sm:$0xff]
    %259 = vset.pattern.permute.xlu0 0
    %260 = vperm.xlu0 %259, %v257
    %v261 = vpop.permute.xlu0 %260
    %263 = vmatprep.subr.mxu0 0.0
    %264 = vmatpush1.xpose.msra.mxu0 %v255
    %265 = vmatprep.subr.mxu0 0.0
    %266 = vmatpush1.xpose.msra.mxu0 %v254
    %267 = vmatprep.subr.mxu0 0.0
    %268 = vmatpush1.xpose.msra.mxu0 %v253
    %269 = vmatprep.subr.mxu0 0.0
    %270 = vmatpush1.xpose.msra.mxu0 %v252
    %271 = vmatprep.subr.mxu0 0.0
    %272 = vmatpush1.xpose.msra.mxu0 %v251
    %273 = vmatprep.subr.mxu0 0.0
    %274 = vmatpush1.xpose.msra.mxu0 %v250
    %275 = vmatprep.subr.mxu0 0.0
    %276 = vmatpush1.xpose.msra.mxu0 %v249
    %277 = vmatprep.subr.mxu0 0.0
    %278 = vmatpush1.xpose.msra.mxu0 %v248
    %279 = vmatprep.subr.mxu0 0.0
    %280 = vmatpush1.xpose.msra.mxu0 %v247
    %281 = vmatprep.subr.mxu0 0.0
    %282 = vmatpush1.xpose.msra.mxu0 %v246
    %283 = vmatprep.subr.mxu0 0.0
    %284 = vmatpush1.xpose.msra.mxu0 %v245
    %285 = vmatprep.subr.mxu0 0.0
    %286 = vmatpush1.xpose.msra.mxu0 %v244
    %287 = vmatprep.subr.mxu0 0.0
    %288 = vmatpush1.xpose.msra.mxu0 %v243
    %289 = vmatprep.subr.mxu0 0.0
    %290 = vmatpush1.xpose.msra.mxu0 %v242
    %291 = vmatprep.subr.mxu0 0.0
    %292 = vmatpush1.xpose.msra.mxu0 %v241
    %293 = vmatprep.subr.mxu0 0.0
    %294 = vmatpush1.xpose.msra.mxu0 %v240
    %295 = vmatprep.subr.mxu0 0.0
    %296 = vmatpush2.xpose.msra.mxu0 0.0
    %297 = vmatprep.subr.mxu0 0.0
    %298 = vmatpush2.xpose.msra.mxu0 0.0
    %299 = vmatprep.subr.mxu0 0.0
    %300 = vmatpush2.xpose.msra.mxu0 0.0
    %301 = vmatprep.subr.mxu0 0.0
    %302 = vmatpush2.xpose.msra.mxu0 0.0
    %303 = vmatprep.subr.mxu0 0.0
    %304 = vmatpush2.xpose.msra.mxu0 0.0
    %305 = vmatprep.subr.mxu0 0.0
    %306 = vmatpush2.xpose.msra.mxu0 0.0
    %307 = vmatprep.subr.mxu0 0.0
    %308 = vmatpush2.xpose.msra.mxu0 0.0
    %309 = vmatprep.subr.mxu0 0.0
    %310 = vmatpush2.xpose.msra.mxu0 0.0
    %311 = vmatprep.subr.mxu0 0.0
    %312 = vmatpush2.xpose.msra.mxu0 0.0
    %313 = vmatprep.subr.mxu0 0.0
    %314 = vmatpush2.xpose.msra.mxu0 0.0
    %315 = vmatprep.subr.mxu0 0.0
    %316 = vmatpush2.xpose.msra.mxu0 0.0
    %317 = vmatprep.subr.mxu0 0.0
    %318 = vmatpush2.xpose.msra.mxu0 0.0
    %319 = vmatprep.subr.mxu0 0.0
    %320 = vmatpush2.xpose.msra.mxu0 0.0
    %321 = vmatprep.subr.mxu0 0.0
    %322 = vmatpush2.xpose.msra.mxu0 0.0
    %323 = vmatprep.subr.mxu0 0.0
    %324 = vmatpush2.xpose.msra.mxu0 0.0
    %325 = vmatprep.subr.mxu0 0.0
    %326 = vmatpush2.xpose.msra.mxu0 0.0
    %327 = vmatprep.mubr.f32.mxu0 0.0
    %328 = vmatmul.mubr.f32.gmra.mxu0 %v256
    %v329 = vpop.f32.mrf.mxu0
    %v330 = vadd.f32 %v261, %v329
    %v331 = vpop.f32.mrf.mxu0
    %332 = vdwg.mxu0
    %333 = vst [vmem:[#allocation2] sm:$0xff] %v330
    // Predicated region
    $region22: #{tpu_custom_call.1} parent=1 // pred_check
      _
    $region23: #{tpu_custom_call.1} parent=1 // pred_check_branch
      %335 = sbr.rel (0) target = $region25
    $region24: #{tpu_custom_call.1} parent=1 // pred_region
      %s337 = ssub.s32 128, 128
      %338 = vsyncadd [#allocation3], %s337
      %s340 = sshll.u32 [#allocation2], 4
      %s341 = int_to_ptr.vmem [resolvable:$true] %s340
      %343 = dma.vmem_to_hbm [thread:$0]  %s341, 128, %s5, [#allocation3]
    $region25: #{tpu_custom_call.1} parent=1 // pred_fallthru
      _
    // Predicated region
    $region26: #{tpu_custom_call.1} parent=1 // pred_check
      _
    $region27: #{tpu_custom_call.1} parent=1 // pred_check_branch
      %345 = sbr.rel (0) target = $region29
    $region28: #{tpu_custom_call.1} parent=1 // pred_region
      %346 = dma.done [#allocation3], 128
    $region29: #{tpu_custom_call.1} parent=1 // pred_fallthru
      _
    %347 = vsyncpa [#allocation3], 1

</llo_original>
